<compile_context>
chip_gen: v5e
topology: v5e:2x2
jax: 0.10.0
libtpu: 0.0.40
codegen_flags: <defaults>
</compile_context>

<pallas_src>
import math
from functools import partial

import jax
import jax.numpy as jnp
from jax.experimental import pallas as pl
from jax.experimental.pallas import tpu as pltpu

# Real layer sizes.
IN_F = 8
H1 = 32
H2 = 32
H3 = 31          # awkward -> padded to H3_PAD
OUT_F = 5        # awkward -> padded to OUT_PAD

# Padded (sublane friendly) sizes.
H3_PAD = 32
OUT_PAD = 8      # 5 -> 8 only (f32 min sublane tile); output store stays unmasked

# Packed parameter slab row offsets (PyTorch (out, in) layout, zero padded).
ROW1 = 0
ROW2 = ROW1 + H1          # 32
ROW3 = ROW2 + H2          # 64
ROW4 = ROW3 + H3_PAD      # 96
W_ROWS = ROW4 + OUT_PAD   # 104  (multiple of 8 -> sublane aligned)

DEFAULT_TB_MAX = 2048     # upper bound on the batch (lane) tile; multiple of 128


def _round_up(x, m):
    return ((x + m - 1) // m) * m


def _choose_tb(B, tb_max=DEFAULT_TB_MAX):
    """Pick the batch (lane) tile: multiple of 128, large for big batches,
    >= 2 tiles when B >= 256 (v7x megacore), bounded padding waste when ragged."""
    B128 = _round_up(max(B, 1), 128)
    if B128 <= 128:
        return 128
    # Keep at least 2 tiles for mid/large batches so the 'parallel' grid axis
    # actually shards over v7x's two TensorCores.
    cap = min(tb_max, B128 // 2 if B >= 256 else B128)
    cap = max(128, (cap // 128) * 128)
    # Largest tile <= cap whose zero-padding waste stays <= ~25% of B.
    tb = cap
    while tb > 128 and (_round_up(B, tb) - B) * 4 > B:
        tb -= 128
    return tb


def dqn_mlp_kernel(x_ref, w_ref, b_ref, o_ref):
    """Fused 4-layer MLP.

    x_ref: (TB, IN_F) natural (batch, feature) tile (bf16 or f32).
    w_ref: (W_ROWS, 32) packed weights, PyTorch (out, in) layout, zero padded.
    b_ref: (W_ROWS, 1) packed bias columns.
    o_ref: (OUT_PAD, TB) padded action values; batch on the lane axis.
    """
    x = x_ref[...].astype(jnp.float32)                         # (TB, 8)

    # Layer 1 (8 -> 32): contract the feature dims of W1 (32, 8) and X (TB, 8);
    # the MXU absorbs the operand transpose, batch lands on the lane axis.
    w1 = w_ref[ROW1:ROW1 + H1, 0:IN_F]                         # (32, 8)
    h = jax.lax.dot_general(w1, x, (((1,), (1,)), ((), ())),
                            preferred_element_type=jnp.float32)
    h = jnp.maximum(h + b_ref[ROW1:ROW1 + H1, :], 0.0)         # (32, TB)

    # Layer 2 (32 -> 32).
    h = jnp.dot(w_ref[ROW2:ROW2 + H2, :], h,
                preferred_element_type=jnp.float32)
    h = jnp.maximum(h + b_ref[ROW2:ROW2 + H2, :], 0.0)         # (32, TB)

    # Layer 3 (32 -> 31, padded to 32; padded row stays exactly 0 through ReLU).
    h = jnp.dot(w_ref[ROW3:ROW3 + H3_PAD, :], h,
                preferred_element_type=jnp.float32)
    h = jnp.maximum(h + b_ref[ROW3:ROW3 + H3_PAD, :], 0.0)     # (32, TB)

    # Layer 4 (31 -> 5, padded to 8) + numerically stable sigmoid.
    logits = jnp.dot(w_ref[ROW4:ROW4 + OUT_PAD, :], h,
                     preferred_element_type=jnp.float32)
    logits = logits + b_ref[ROW4:ROW4 + OUT_PAD, :]            # (8, TB)
    z = jnp.exp(-jnp.abs(logits))                              # EUP, no overflow
    num = jnp.where(logits >= 0.0, 1.0, z)
    o_ref[...] = num * pl.reciprocal(1.0 + z, approx=True)     # EUP reciprocal


def init_linear_params(key, out_features, in_features):
    """PyTorch nn.Linear default init: U(-1/sqrt(fan_in), 1/sqrt(fan_in))."""
    k_w, k_b = jax.random.split(key)
    bound = 1.0 / math.sqrt(in_features)
    w = jax.random.uniform(k_w, (out_features, in_features),
                           minval=-bound, maxval=bound, dtype=jnp.float32)
    b = jax.random.uniform(k_b, (out_features,),
                           minval=-bound, maxval=bound, dtype=jnp.float32)
    return w, b


def make_dqn_params(key):
    """Raw PyTorch-style parameters (out_features, in_features)."""
    keys = jax.random.split(key, 4)
    w1, b1 = init_linear_params(keys[0], H1, IN_F)    # input_layer   8 -> 32
    w2, b2 = init_linear_params(keys[1], H2, H1)      # hidden_1     32 -> 32
    w3, b3 = init_linear_params(keys[2], H3, H2)      # hidden_2     32 -> 31
    w4, b4 = init_linear_params(keys[3], OUT_F, H3)   # output_layer 31 -> 5
    return (w1, b1, w2, b2, w3, b3, w4, b4)


def prepare_kernel_params(raw_params):
    """One-time packing of all weights/biases into two zero-padded VMEM slabs.

    Zero padding is inert: padded hidden_2 unit stays 0 through ReLU and its
    layer-4 column is zero; padded output rows are sliced off after the call.
    """
    (w1, b1, w2, b2, w3, b3, w4, b4) = raw_params

    w_all = jnp.zeros((W_ROWS, H2), jnp.float32)
    w_all = w_all.at[ROW1:ROW1 + H1, :IN_F].set(w1)      # (32, 8)  in cols 0:8
    w_all = w_all.at[ROW2:ROW2 + H2, :H1].set(w2)        # (32, 32)
    w_all = w_all.at[ROW3:ROW3 + H3, :H2].set(w3)        # (31, 32)
    w_all = w_all.at[ROW4:ROW4 + OUT_F, :H3].set(w4)     # (5, 31)

    b_all = jnp.zeros((W_ROWS, 1), jnp.float32)
    b_all = b_all.at[ROW1:ROW1 + H1, 0].set(b1)
    b_all = b_all.at[ROW2:ROW2 + H2, 0].set(b2)
    b_all = b_all.at[ROW3:ROW3 + H3, 0].set(b3)
    b_all = b_all.at[ROW4:ROW4 + OUT_F, 0].set(b4)

    return (w_all, b_all)


@partial(jax.jit, static_argnames=("tb_max", "x_dtype"))
def dqn_forward(state, kernel_params, *, tb_max=DEFAULT_TB_MAX,
                x_dtype=jnp.bfloat16):
    """Mirrors DQN_Network.forward.

    `state` may carry size-1 dims (squeezed away like the PyTorch module).
    `x_dtype=jnp.bfloat16` halves input HBM traffic (v6e/v7x friendly);
    use jnp.float32 for bit-faithful f32 ingest.
    """
    x = jnp.squeeze(state)
    single = (x.ndim == 1)
    if single:                     # single-sample case after squeeze
        x = x[None, :]
    B = x.shape[0]

    x = x.astype(x_dtype)

    TB = _choose_tb(B, tb_max)
    B_pad = _round_up(B, TB)
    grid_b = B_pad // TB
    if B_pad != B:                 # only ragged batches pay a (tiny) pad copy
        x = jnp.pad(x, ((0, B_pad - B), (0, 0)))

    (w_all, b_all) = kernel_params
    resident = lambda i: (0, 0)    # params: same block every step -> VMEM-resident

    out = pl.pallas_call(
        dqn_mlp_kernel,
        out_shape=jax.ShapeDtypeStruct((OUT_PAD, B_pad), jnp.float32),
        grid_spec=pltpu.PrefetchScalarGridSpec(
            num_scalar_prefetch=0,
            grid=(grid_b,),
            in_specs=[
                pl.BlockSpec((TB, IN_F), lambda i: (i, 0)),   # x tile, natural layout
                pl.BlockSpec((W_ROWS, H2), resident),         # packed weights
                pl.BlockSpec((W_ROWS, 1), resident),          # packed biases
            ],
            out_specs=pl.BlockSpec((OUT_PAD, TB), lambda i: (0, i)),
        ),
        compiler_params=pltpu.CompilerParams(
            dimension_semantics=("parallel",),   # v7x: shard batch tiles over 2 TCs
        ),
    )(x, w_all, b_all)

    # Drop padded output rows / padded batch columns; back to (B, 5).
    out = out[:OUT_F, :B].T
    return out[0] if single else out


def dqn_forward_ref(state, raw_params, x_dtype=jnp.float32):
    """Pure-JAX reference on the un-padded PyTorch-style params."""
    x = jnp.squeeze(state)
    single = (x.ndim == 1)
    if single:
        x = x[None, :]
    x = x.astype(x_dtype).astype(jnp.float32)   # match the kernel's ingest dtype
    (w1, b1, w2, b2, w3, b3, w4, b4) = raw_params
    h = jax.nn.relu(x @ w1.T + b1)
    h = jax.nn.relu(h @ w2.T + b2)
    h = jax.nn.relu(h @ w3.T + b3)
    out = jax.nn.sigmoid(h @ w4.T + b4)
    return out[0] if single else out


if __name__ == "__main__":
    key = jax.random.PRNGKey(0)
    k_params, k_x = jax.random.split(key)

    raw_params = make_dqn_params(k_params)
    kernel_params = prepare_kernel_params(raw_params)   # one-time pack/pad

    # Small batch of states; extra size-1 dim exercises the .squeeze() path.
    batch = 2
    state = jax.random.normal(k_x, (batch, 1, IN_F), dtype=jnp.float32)

    out = jax.block_until_ready(dqn_forward(state, kernel_params))
    ref = dqn_forward_ref(state, raw_params, x_dtype=jnp.bfloat16)
    assert out.shape == (batch, OUT_F), out.shape
    assert jnp.allclose(out, ref, atol=5e-3, rtol=0), "mismatch vs reference (bf16 ingest)"

    # Full-f32 ingest path.
    out32 = jax.block_until_ready(
        dqn_forward(state, kernel_params, x_dtype=jnp.float32))
    ref32 = dqn_forward_ref(state, raw_params, x_dtype=jnp.float32)
    assert jnp.allclose(out32, ref32, atol=5e-3, rtol=0), "mismatch vs reference (f32 ingest)"

    # Ragged, multi-tile batch (exercises grid > 1 and the adaptive tile choice).
    big_state = jax.random.normal(k_x, (1037, 1, IN_F), dtype=jnp.float32)
    big_out = jax.block_until_ready(dqn_forward(big_state, kernel_params))
    big_ref = dqn_forward_ref(big_state, raw_params, x_dtype=jnp.bfloat16)
    assert big_out.shape == (1037, OUT_F), big_out.shape
    assert jnp.allclose(big_out, big_ref, atol=5e-3, rtol=0), "mismatch (large batch)"

    print("KERNEL_OK")
</pallas_src>

<mosaic_0001>
module attributes {stable_mosaic.version = 11 : i64} {
  func.func @dqn_mlp_kernel(%arg0: i32, %arg1: memref<128x8xbf16, #tpu.memory_space<vmem>>, %arg2: memref<104x32xf32, #tpu.memory_space<vmem>>, %arg3: memref<104x1xf32, #tpu.memory_space<vmem>>, %arg4: memref<8x128xf32, #tpu.memory_space<vmem>>) attributes {dimension_semantics = [#tpu.dimension_semantics<parallel>], iteration_bounds = array<i64: 1>, scalar_prefetch = 0 : i64, scratch_operands = 0 : i64, tpu.core_type = #tpu.core_type<tc>, window_params = [{transform_indices = @transform_0, window_bounds = array<i64: 128, 8>}, {pipeline_mode = #tpu.pipeline_mode<synchronous>, transform_indices = @transform_1, window_bounds = array<i64: 104, 32>}, {pipeline_mode = #tpu.pipeline_mode<synchronous>, transform_indices = @transform_2, window_bounds = array<i64: 104, 1>}, {transform_indices = @transform_3, window_bounds = array<i64: 8, 128>}]} {
    %c0 = arith.constant 0 : index
    %c0_0 = arith.constant 0 : index
    %0 = vector.load %arg1[%c0, %c0_0] : memref<128x8xbf16, #tpu.memory_space<vmem>>, vector<128x8xbf16>
    %1 = arith.extf %0 : vector<128x8xbf16> to vector<128x8xf32>
    %c0_1 = arith.constant 0 : index
    %c0_2 = arith.constant 0 : index
    %2 = vector.load %arg2[%c0_1, %c0_2] : memref<104x32xf32, #tpu.memory_space<vmem>>, vector<32x8xf32>
    %cst = arith.constant dense<0.000000e+00> : vector<32x128xf32>
    %3 = tpu.matmul %2, %1, %cst {dimension_numbers = #tpu.dot_dimension_numbers<[1], [1], [0], [0], [0, 0, 1, 0], [], []>} : vector<32x8xf32>, vector<128x8xf32>, vector<32x128xf32> -> vector<32x128xf32>
    %c0_3 = arith.constant 0 : index
    %c0_4 = arith.constant 0 : index
    %4 = vector.load %arg3[%c0_3, %c0_4] : memref<104x1xf32, #tpu.memory_space<vmem>>, vector<32x1xf32>
    %5 = vector.broadcast %4 : vector<32x1xf32> to vector<32x128xf32>
    %6 = arith.addf %3, %5 : vector<32x128xf32>
    %cst_5 = arith.constant 0.000000e+00 : f32
    %7 = vector.broadcast %cst_5 : f32 to vector<32x128xf32>
    %8 = arith.maximumf %6, %7 : vector<32x128xf32>
    %c32 = arith.constant 32 : index
    %c0_6 = arith.constant 0 : index
    %9 = vector.load %arg2[%c32, %c0_6] : memref<104x32xf32, #tpu.memory_space<vmem>>, vector<32x32xf32>
    %cst_7 = arith.constant dense<0.000000e+00> : vector<32x128xf32>
    %10 = tpu.matmul %9, %8, %cst_7 {dimension_numbers = #tpu.dot_dimension_numbers<[1], [0], [0], [1], [0, 0, 1, 1], [], []>} : vector<32x32xf32>, vector<32x128xf32>, vector<32x128xf32> -> vector<32x128xf32>
    %c32_8 = arith.constant 32 : index
    %c0_9 = arith.constant 0 : index
    %11 = vector.load %arg3[%c32_8, %c0_9] : memref<104x1xf32, #tpu.memory_space<vmem>>, vector<32x1xf32>
    %12 = vector.broadcast %11 : vector<32x1xf32> to vector<32x128xf32>
    %13 = arith.addf %10, %12 : vector<32x128xf32>
    %cst_10 = arith.constant 0.000000e+00 : f32
    %14 = vector.broadcast %cst_10 : f32 to vector<32x128xf32>
    %15 = arith.maximumf %13, %14 : vector<32x128xf32>
    %c64 = arith.constant 64 : index
    %c0_11 = arith.constant 0 : index
    %16 = vector.load %arg2[%c64, %c0_11] : memref<104x32xf32, #tpu.memory_space<vmem>>, vector<32x32xf32>
    %cst_12 = arith.constant dense<0.000000e+00> : vector<32x128xf32>
    %17 = tpu.matmul %16, %15, %cst_12 {dimension_numbers = #tpu.dot_dimension_numbers<[1], [0], [0], [1], [0, 0, 1, 1], [], []>} : vector<32x32xf32>, vector<32x128xf32>, vector<32x128xf32> -> vector<32x128xf32>
    %c64_13 = arith.constant 64 : index
    %c0_14 = arith.constant 0 : index
    %18 = vector.load %arg3[%c64_13, %c0_14] : memref<104x1xf32, #tpu.memory_space<vmem>>, vector<32x1xf32>
    %19 = vector.broadcast %18 : vector<32x1xf32> to vector<32x128xf32>
    %20 = arith.addf %17, %19 : vector<32x128xf32>
    %cst_15 = arith.constant 0.000000e+00 : f32
    %21 = vector.broadcast %cst_15 : f32 to vector<32x128xf32>
    %22 = arith.maximumf %20, %21 : vector<32x128xf32>
    %c96 = arith.constant 96 : index
    %c0_16 = arith.constant 0 : index
    %23 = vector.load %arg2[%c96, %c0_16] : memref<104x32xf32, #tpu.memory_space<vmem>>, vector<8x32xf32>
    %cst_17 = arith.constant dense<0.000000e+00> : vector<8x128xf32>
    %24 = tpu.matmul %23, %22, %cst_17 {dimension_numbers = #tpu.dot_dimension_numbers<[1], [0], [0], [1], [0, 0, 1, 1], [], []>} : vector<8x32xf32>, vector<32x128xf32>, vector<8x128xf32> -> vector<8x128xf32>
    %c96_18 = arith.constant 96 : index
    %c0_19 = arith.constant 0 : index
    %25 = vector.load %arg3[%c96_18, %c0_19] : memref<104x1xf32, #tpu.memory_space<vmem>>, vector<8x1xf32>
    %26 = vector.broadcast %25 : vector<8x1xf32> to vector<8x128xf32>
    %27 = arith.addf %24, %26 : vector<8x128xf32>
    %28 = math.absf %27 : vector<8x128xf32>
    %cst_20 = arith.constant 0.000000e+00 : f32
    %29 = vector.broadcast %cst_20 : f32 to vector<8x128xf32>
    %30 = arith.subf %29, %28 : vector<8x128xf32>
    %31 = math.exp %30 : vector<8x128xf32>
    %cst_21 = arith.constant 0.000000e+00 : f32
    %32 = vector.broadcast %cst_21 : f32 to vector<8x128xf32>
    %33 = arith.cmpf oge, %27, %32 : vector<8x128xf32>
    %cst_22 = arith.constant 1.000000e+00 : f32
    %34 = vector.broadcast %cst_22 : f32 to vector<8x128xf32>
    %35 = arith.select %33, %34, %31 : vector<8x128xi1>, vector<8x128xf32>
    %cst_23 = arith.constant 1.000000e+00 : f32
    %36 = vector.broadcast %cst_23 : f32 to vector<8x128xf32>
    %37 = arith.addf %36, %31 : vector<8x128xf32>
    %38 = tpu.reciprocal %37 {approx = true} : vector<8x128xf32> -> vector<8x128xf32>
    %39 = arith.mulf %35, %38 : vector<8x128xf32>
    %c0_24 = arith.constant 0 : index
    %c0_25 = arith.constant 0 : index
    %40 = vector.load %arg4[%c0_24, %c0_25] : memref<8x128xf32, #tpu.memory_space<vmem>>, vector<8x128xf32>
    tpu.vector_store %arg4[%c0_24, %c0_25], %39 {strides = array<i32>} : memref<8x128xf32, #tpu.memory_space<vmem>>, vector<8x128xf32>,
    return
  }
  func.func @transform_0(%arg0: i32) -> (i32, i32) {
    %c0_i32 = arith.constant 0 : i32
    %c0_i32_0 = arith.constant 0 : i32
    return %arg0, %c0_i32 : i32, i32
  }
  func.func @transform_1(%arg0: i32) -> (i32, i32) {
    %c0_i32 = arith.constant 0 : i32
    %c0_i32_0 = arith.constant 0 : i32
    %c0_i32_1 = arith.constant 0 : i32
    return %c0_i32, %c0_i32_0 : i32, i32
  }
  func.func @transform_2(%arg0: i32) -> (i32, i32) {
    %c0_i32 = arith.constant 0 : i32
    %c0_i32_0 = arith.constant 0 : i32
    %c0_i32_1 = arith.constant 0 : i32
    return %c0_i32, %c0_i32_0 : i32, i32
  }
  func.func @transform_3(%arg0: i32) -> (i32, i32) {
    %c0_i32 = arith.constant 0 : i32
    %c0_i32_0 = arith.constant 0 : i32
    return %c0_i32, %arg0 : i32, i32
  }
}

</mosaic_0001>

<llo_original>
// kernel: dqn_forward.1
$region0: #{dqn_forward.1}
  #allocation0 [shape = 'u32[]', space=smem, size = 0x4, offset = 0x4, fixed_abs, tag = 'smem constant byte address 0x4 - core index']
  #allocation1 [shape = 'u32[72,128]{1,0:T(1,128)}', space=vmem, size = 0x9000, scoped, tag = 'internal scratch']
  %s0 = inlined_call_operand.vmem [shape: bf16[128,8], index: 0, kind: input, shape index: {}]
  %s1 = inlined_call_operand.vmem [shape: f32[104,32], index: 1, kind: input, shape index: {}]
  %s2 = inlined_call_operand.vmem [shape: f32[104,1], index: 2, kind: input, shape index: {}]
  %s3 = inlined_call_operand.vmem [shape: f32[8,128], index: 3, kind: output, shape index: {}]
  %s4 = sld [smem:[#allocation0]]
  $region22: #{dqn_forward.1} parent=0
    _
  %s6 = ssub.s32 1, %s4
  %s7 = scalar_select 0, %s6, %s4
  // Predicated region
  $region2: #{dqn_forward.1} parent=0 // pred_check
    _
  $region3: #{dqn_forward.1} parent=0 // pred_check_branch
    %9 = sbr.rel (0) target = $region5
  $region4: #{dqn_forward.1} parent=0 // pred_region
    _
  $region5: #{dqn_forward.1} parent=0 // pred_fallthru
    _
  // Predicated region
  $region6: #{dqn_forward.1} parent=0 // pred_check
    _
  $region7: #{dqn_forward.1} parent=0 // pred_check_branch
    %11 = sbr.rel (0) target = $region9
  $region8: #{dqn_forward.1} parent=0 // pred_region
    _
  $region9: #{dqn_forward.1} parent=0 // pred_fallthru
    _
  // Predicated region
  $region10: #{dqn_forward.1} parent=0 // pred_check
    _
  $region11: #{dqn_forward.1} parent=0 // pred_check_branch
    %13 = sbr.rel (0) target = $region13
  $region12: #{dqn_forward.1} parent=0 // pred_region
    _
  $region13: #{dqn_forward.1} parent=0 // pred_fallthru
    _
  %v14 = vld [vmem:[%s0] sm:$0xf]
  %v15 = vld [vmem:[%s0 + $0x4] sm:$0xf]
  %v16 = vld [vmem:[%s0 + $0x8] sm:$0xf]
  %v17 = vld [vmem:[%s0 + $0xc] sm:$0xf]
  %v18 = vld [vmem:[%s0 + $0x10] sm:$0xf]
  %v19 = vld [vmem:[%s0 + $0x14] sm:$0xf]
  %v20 = vld [vmem:[%s0 + $0x18] sm:$0xf]
  %v21 = vld [vmem:[%s0 + $0x1c] sm:$0xf]
  %v22 = vld [vmem:[%s0 + $0x20] sm:$0xf]
  %v23 = vld [vmem:[%s0 + $0x24] sm:$0xf]
  %v24 = vld [vmem:[%s0 + $0x28] sm:$0xf]
  %v25 = vld [vmem:[%s0 + $0x2c] sm:$0xf]
  %v26 = vld [vmem:[%s0 + $0x30] sm:$0xf]
  %v27 = vld [vmem:[%s0 + $0x34] sm:$0xf]
  %v28 = vld [vmem:[%s0 + $0x38] sm:$0xf]
  %v29 = vld [vmem:[%s0 + $0x3c] sm:$0xf]
  %v30 = vunpack.c.l.bf16 %v14
  %v31 = vunpack.c.l.bf16 %v15
  %v32 = vunpack.c.l.bf16 %v16
  %v33 = vunpack.c.l.bf16 %v17
  %v34 = vunpack.c.l.bf16 %v18
  %v35 = vunpack.c.l.bf16 %v19
  %v36 = vunpack.c.l.bf16 %v20
  %v37 = vunpack.c.l.bf16 %v21
  %v38 = vunpack.c.l.bf16 %v22
  %v39 = vunpack.c.l.bf16 %v23
  %v40 = vunpack.c.l.bf16 %v24
  %v41 = vunpack.c.l.bf16 %v25
  %v42 = vunpack.c.l.bf16 %v26
  %v43 = vunpack.c.l.bf16 %v27
  %v44 = vunpack.c.l.bf16 %v28
  %v45 = vunpack.c.l.bf16 %v29
  %v46 = vld [vmem:[%s1] sm:$0xff]
  %v47 = vld [vmem:[%s1 + $0x8] sm:$0xff]
  %v48 = vld [vmem:[%s1 + $0x10] sm:$0xff]
  %v49 = vld [vmem:[%s1 + $0x18] sm:$0xff]
  %v50 = vld [vmem:[%s2] sm:$0xff]
  %v51 = vld [vmem:[%s2 + $0x8] sm:$0xff]
  %v52 = vld [vmem:[%s2 + $0x10] sm:$0xff]
  %v53 = vld [vmem:[%s2 + $0x18] sm:$0xff]
  %55 = vset.pattern.permute.xlu0 0
  %56 = vperm.xlu0 %55, %v50
  %v57 = vpop.permute.xlu0 %56
  %60 = vset.pattern.permute.xlu0 0
  %61 = vperm.xlu0 %60, %v51
  %v62 = vpop.permute.xlu0 %61
  %65 = vset.pattern.permute.xlu0 0
  %66 = vperm.xlu0 %65, %v52
  %v67 = vpop.permute.xlu0 %66
  %70 = vset.pattern.permute.xlu0 0
  %71 = vperm.xlu0 %70, %v53
  %v72 = vpop.permute.xlu0 %71
  %vm74 = vcmask 64512
  %v76 = vsel %vm74, %v46, 0
  %v79 = vsel %vm74, %v47, 0
  %v82 = vsel %vm74, %v48, 0
  %v85 = vsel %vm74, %v49, 0
  %v88 = vsel %vm74, %v30, 0
  %v91 = vsel %vm74, %v31, 0
  %v94 = vsel %vm74, %v32, 0
  %v97 = vsel %vm74, %v33, 0
  %v100 = vsel %vm74, %v34, 0
  %v103 = vsel %vm74, %v35, 0
  %v106 = vsel %vm74, %v36, 0
  %v109 = vsel %vm74, %v37, 0
  %v112 = vsel %vm74, %v38, 0
  %v115 = vsel %vm74, %v39, 0
  %v118 = vsel %vm74, %v40, 0
  %v121 = vsel %vm74, %v41, 0
  %v124 = vsel %vm74, %v42, 0
  %v127 = vsel %vm74, %v43, 0
  %v130 = vsel %vm74, %v44, 0
  %v133 = vsel %vm74, %v45, 0
  %135 = vmatpush.xpose.msra.mxu0 %v133
  %136 = vmatpush.xpose.msra.mxu0 %v130
  %137 = vmatpush.xpose.msra.mxu0 %v127
  %138 = vmatpush.xpose.msra.mxu0 %v124
  %139 = vmatpush.xpose.msra.mxu0 %v121
  %140 = vmatpush.xpose.msra.mxu0 %v118
  %141 = vmatpush.xpose.msra.mxu0 %v115
  %142 = vmatpush.xpose.msra.mxu0 %v112
  %143 = vmatpush.xpose.msra.mxu0 %v109
  %144 = vmatpush.xpose.msra.mxu0 %v106
  %145 = vmatpush.xpose.msra.mxu0 %v103
  %146 = vmatpush.xpose.msra.mxu0 %v100
  %147 = vmatpush.xpose.msra.mxu0 %v97
  %148 = vmatpush.xpose.msra.mxu0 %v94
  %149 = vmatpush.xpose.msra.mxu0 %v91
  %150 = vmatpush.xpose.msra.mxu0 %v88
  %151 = vmatmul.f32.gmra.mxu0 %v76
  %v152 = vpop.f32.mrf.mxu0
  %v153 = vadd.f32 %v57, %v152
  %154 = vmatmul.f32.gmra.mxu0 %v79
  %v155 = vpop.f32.mrf.mxu0
  %v156 = vadd.f32 %v62, %v155
  %157 = vmatmul.f32.gmra.mxu0 %v82
  %v158 = vpop.f32.mrf.mxu0
  %v159 = vadd.f32 %v67, %v158
  %160 = vmatmul.f32.gmra.mxu0 %v85
  %v161 = vpop.f32.mrf.mxu0
  %v162 = vadd.f32 %v72, %v161
  %163 = vdwg.mxu0
  %v164 = vmax.f32 %v153, 0.0
  %v165 = vmax.f32 %v156, 0.0
  %v166 = vmax.f32 %v159, 0.0
  %v167 = vmax.f32 %v162, 0.0
  %v168 = vld [vmem:[%s1 + $0x20] sm:$0xff]
  %v169 = vld [vmem:[%s1 + $0x28] sm:$0xff]
  %v170 = vld [vmem:[%s1 + $0x30] sm:$0xff]
  %v171 = vld [vmem:[%s1 + $0x38] sm:$0xff]
  %v172 = vld [vmem:[%s2 + $0x20] sm:$0xff]
  %v173 = vld [vmem:[%s2 + $0x28] sm:$0xff]
  %v174 = vld [vmem:[%s2 + $0x30] sm:$0xff]
  %v175 = vld [vmem:[%s2 + $0x38] sm:$0xff]
  %177 = vset.pattern.permute.xlu0 0
  %178 = vperm.xlu0 %177, %v172
  %v179 = vpop.permute.xlu0 %178
  %182 = vset.pattern.permute.xlu0 0
  %183 = vperm.xlu0 %182, %v173
  %v184 = vpop.permute.xlu0 %183
  %187 = vset.pattern.permute.xlu0 0
  %188 = vperm.xlu0 %187, %v174
  %v189 = vpop.permute.xlu0 %188
  %192 = vset.pattern.permute.xlu0 0
  %193 = vperm.xlu0 %192, %v175
  %v194 = vpop.permute.xlu0 %193
  %vm196 = vcmask 261120
  %v198 = vsel %vm196, %v168, 0
  %v201 = vsel %vm196, %v169, 0
  %v204 = vsel %vm196, %v170, 0
  %v207 = vsel %vm196, %v171, 0
  %209 = vmatpush.msra.mxu0 0.0
  %210 = vmatpush.msra.mxu0 0.0
  %211 = vmatpush.msra.mxu0 0.0
  %212 = vmatpush.msra.mxu0 0.0
  %213 = vmatpush.msra.mxu0 0.0
  %214 = vmatpush.msra.mxu0 0.0
  %215 = vmatpush.msra.mxu0 0.0
  %216 = vmatpush.msra.mxu0 0.0
  %217 = vmatpush.msra.mxu0 0.0
  %218 = vmatpush.msra.mxu0 0.0
  %219 = vmatpush.msra.mxu0 0.0
  %220 = vmatpush.msra.mxu0 0.0
  %221 = vmatpush.msra.mxu0 %v167
  %222 = vmatpush.msra.mxu0 %v166
  %223 = vmatpush.msra.mxu0 %v165
  %224 = vmatpush.msra.mxu0 %v164
  %225 = vmatmul.f32.gmra.mxu0 %v198
  %v226 = vpop.f32.mrf.mxu0
  %v227 = vadd.f32 %v179, %v226
  %228 = vmatmul.f32.gmra.mxu0 %v201
  %v229 = vpop.f32.mrf.mxu0
  %v230 = vadd.f32 %v184, %v229
  %231 = vmatmul.f32.gmra.mxu0 %v204
  %v232 = vpop.f32.mrf.mxu0
  %v233 = vadd.f32 %v189, %v232
  %234 = vmatmul.f32.gmra.mxu0 %v207
  %v235 = vpop.f32.mrf.mxu0
  %v236 = vadd.f32 %v194, %v235
  %237 = vdwg.mxu0
  %v238 = vmax.f32 %v227, 0.0
  %v239 = vmax.f32 %v230, 0.0
  %v240 = vmax.f32 %v233, 0.0
  %v241 = vmax.f32 %v236, 0.0
  %v242 = vld [vmem:[%s1 + $0x40] sm:$0xff]
  %v243 = vld [vmem:[%s1 + $0x48] sm:$0xff]
  %v244 = vld [vmem:[%s1 + $0x50] sm:$0xff]
  %v245 = vld [vmem:[%s1 + $0x58] sm:$0xff]
  %v246 = vld [vmem:[%s2 + $0x40] sm:$0xff]
  %v247 = vld [vmem:[%s2 + $0x48] sm:$0xff]
  %v248 = vld [vmem:[%s2 + $0x50] sm:$0xff]
  %v249 = vld [vmem:[%s2 + $0x58] sm:$0xff]
  %251 = vset.pattern.permute.xlu0 0
  %252 = vperm.xlu0 %251, %v246
  %v253 = vpop.permute.xlu0 %252
  %256 = vset.pattern.permute.xlu0 0
  %257 = vperm.xlu0 %256, %v247
  %v258 = vpop.permute.xlu0 %257
  %261 = vset.pattern.permute.xlu0 0
  %262 = vperm.xlu0 %261, %v248
  %v263 = vpop.permute.xlu0 %262
  %266 = vset.pattern.permute.xlu0 0
  %267 = vperm.xlu0 %266, %v249
  %v268 = vpop.permute.xlu0 %267
  %v271 = vsel %vm196, %v242, 0
  %v274 = vsel %vm196, %v243, 0
  %v277 = vsel %vm196, %v244, 0
  %v280 = vsel %vm196, %v245, 0
  %282 = vmatpush.msra.mxu0 0.0
  %283 = vmatpush.msra.mxu0 0.0
  %284 = vmatpush.msra.mxu0 0.0
  %285 = vmatpush.msra.mxu0 0.0
  %286 = vmatpush.msra.mxu0 0.0
  %287 = vmatpush.msra.mxu0 0.0
  %288 = vmatpush.msra.mxu0 0.0
  %289 = vmatpush.msra.mxu0 0.0
  %290 = vmatpush.msra.mxu0 0.0
  %291 = vmatpush.msra.mxu0 0.0
  %292 = vmatpush.msra.mxu0 0.0
  %293 = vmatpush.msra.mxu0 0.0
  %294 = vmatpush.msra.mxu0 %v241
  %295 = vmatpush.msra.mxu0 %v240
  %296 = vmatpush.msra.mxu0 %v239
  %297 = vmatpush.msra.mxu0 %v238
  %298 = vmatmul.f32.gmra.mxu0 %v271
  %v299 = vpop.f32.mrf.mxu0
  %v300 = vadd.f32 %v253, %v299
  %301 = vmatmul.f32.gmra.mxu0 %v274
  %v302 = vpop.f32.mrf.mxu0
  %v303 = vadd.f32 %v258, %v302
  %304 = vmatmul.f32.gmra.mxu0 %v277
  %v305 = vpop.f32.mrf.mxu0
  %v306 = vadd.f32 %v263, %v305
  %307 = vmatmul.f32.gmra.mxu0 %v280
  %v308 = vpop.f32.mrf.mxu0
  %v309 = vadd.f32 %v268, %v308
  %310 = vdwg.mxu0
  %v311 = vmax.f32 %v300, 0.0
  %v312 = vmax.f32 %v303, 0.0
  %v313 = vmax.f32 %v306, 0.0
  %v314 = vmax.f32 %v309, 0.0
  %v315 = vld [vmem:[%s1 + $0x60] sm:$0xff]
  %v316 = vld [vmem:[%s2 + $0x60] sm:$0xff]
  %318 = vset.pattern.permute.xlu0 0
  %319 = vperm.xlu0 %318, %v316
  %v320 = vpop.permute.xlu0 %319
  %v323 = vsel %vm196, %v315, 0
  %325 = vmatpush.msra.mxu0 0.0
  %326 = vmatpush.msra.mxu0 0.0
  %327 = vmatpush.msra.mxu0 0.0
  %328 = vmatpush.msra.mxu0 0.0
  %329 = vmatpush.msra.mxu0 0.0
  %330 = vmatpush.msra.mxu0 0.0
  %331 = vmatpush.msra.mxu0 0.0
  %332 = vmatpush.msra.mxu0 0.0
  %333 = vmatpush.msra.mxu0 0.0
  %334 = vmatpush.msra.mxu0 0.0
  %335 = vmatpush.msra.mxu0 0.0
  %336 = vmatpush.msra.mxu0 0.0
  %337 = vmatpush.msra.mxu0 %v314
  %338 = vmatpush.msra.mxu0 %v313
  %339 = vmatpush.msra.mxu0 %v312
  %340 = vmatpush.msra.mxu0 %v311
  %341 = vmatmul.f32.gmra.mxu0 %v323
  %v342 = vpop.f32.mrf.mxu0
  %v343 = vadd.f32 %v320, %v342
  %344 = vdwg.mxu0
  %v345 = vand.u32 2147483647, %v343
  %v346 = vsub.f32 0.0, %v345
  %v347 = vmul.f32 %v346, 1.442695
  %v348 = vpow.pop %v347
  %vm349 = vcmp.ge.f32.partialorder %v343, 0.0
  %v350 = vsel %vm349, 1.0, %v348
  %v351 = vadd.f32 %v348, 1.0
  %v352 = vrcp.pop %v351
  %v353 = vmul.f32 %v350, %v352
  %354 = vst [vmem:[%s3] sm:$0xff] %v353
  // Predicated region
  $region14: #{dqn_forward.1} parent=0 // pred_check
    _
  $region15: #{dqn_forward.1} parent=0 // pred_check_branch
    %356 = sbr.rel (0) target = $region17
  $region16: #{dqn_forward.1} parent=0 // pred_region
    _
  $region17: #{dqn_forward.1} parent=0 // pred_fallthru
    _
  // Predicated region
  $region18: #{dqn_forward.1} parent=0 // pred_check
    _
  $region19: #{dqn_forward.1} parent=0 // pred_check_branch
    %358 = sbr.rel (0) target = $region21
  $region20: #{dqn_forward.1} parent=0 // pred_region
    _
  $region21: #{dqn_forward.1} parent=0 // pred_fallthru
    _

</llo_original>
